<compile_context>
chip_gen: v7x
topology: tpu7x:2x2x1
jax: 0.10.0
libtpu: 0.0.40
codegen_flags: <defaults>
</compile_context>

<pallas_src>
import jax
import jax.numpy as jnp
from jax.experimental import pallas as pl
from jax.experimental.pallas import tpu as pltpu

LANE = 128
SUBLANE = 8
FUSE_MAX_NPAD = 256   # below this, run the whole forward in a single kernel


def _round_up(n, m):
    return ((n + m - 1) // m) * m


def _vmem_cap_bytes():
    """Generation-aware VMEM cap (~75% of physical per-core VMEM)."""
    phys = 64 << 20   # conservative default (v7x per-TC VMEM)
    try:
        info = pltpu.get_tpu_info()
        for attr in ("vmem_capacity_bytes", "vmem_bytes", "vmem_size_bytes"):
            val = getattr(info, attr, None)
            if val:
                phys = int(val)
                break
    except Exception:
        pass
    return int(min(max((phys * 3) // 4, 16 << 20), 100 << 20))


def _vmem_limit(in_bytes, out_bytes, scratch_bytes, cap):
    # double-buffered inputs/outputs + scratch + headroom for in-kernel temps.
    need = 2 * (in_bytes + out_bytes) + scratch_bytes + (4 << 20)
    return int(min(max(need, 16 << 20), cap))


# ---------------------------------------------------------------------------
# Fused kernel (small graphs): conv1 + conv2 + mean-pool + fc1 + fc2
# ---------------------------------------------------------------------------
def fused_kernel(a_ref, x_ref, w1_ref, b1_ref, w2_ref, b2_ref,
                 p_ref, w3_ref, b3_ref, w4_ref, b4_ref, out_ref):
    f32, bf16 = jnp.float32, jnp.bfloat16
    a = a_ref[...]                                                   # [N,N] bf16
    # conv1: A @ x with a single feature -> VPU multiply + XLU lane reduce.
    ax = jnp.sum(a.astype(f32) * x_ref[...], axis=-1, keepdims=True)  # [N,1]
    h1 = jnp.maximum(ax * w1_ref[...] + b1_ref[...], 0.0)             # [N,H]
    # conv2 (aggregation-first): relu((A @ h1) @ w2 + b2), f32 MXU accumulation.
    agg = jnp.dot(a, h1.astype(bf16), preferred_element_type=f32)
    h2 = jnp.maximum(
        jnp.dot(agg.astype(bf16), w2_ref[...], preferred_element_type=f32)
        + b2_ref[...], 0.0)
    # global_mean_pool + fc1 + relu
    pooled = jnp.dot(p_ref[...], h2.astype(bf16), preferred_element_type=f32)
    h3 = jnp.maximum(
        jnp.dot(pooled.astype(bf16), w3_ref[...], preferred_element_type=f32)
        + b3_ref[...], 0.0)
    # fc2 (single output feature): VPU multiply + XLU lane reduce, no MXU pass.
    val = jnp.sum(h3 * w4_ref[...], axis=-1, keepdims=True) + b4_ref[...]
    out_ref[...] = jnp.broadcast_to(val, out_ref.shape).astype(out_ref.dtype)


# ---------------------------------------------------------------------------
# Split-path kernels (large graphs): row-tiled x K-tiled with f32 accumulators
# ---------------------------------------------------------------------------
def gcn1_kernel(a_ref, x_ref, w1_ref, b1_ref, out_ref, acc_ref):
    """relu((A @ x) * w1 + b1) for one (row, K) tile.

    a: [TM, TK] bf16   x: [1, TK] f32 (lane-dense)
    w1, b1: [1, H_pad] f32   out: [TM, H_pad] bf16   acc: [TM, 1] f32 scratch
    """
    k = pl.program_id(1)

    @pl.when(k == 0)
    def _():
        acc_ref[...] = jnp.zeros_like(acc_ref)

    # K=1 feature: weighted row-sums of the A tile (VPU + XLU, no MXU).
    acc_ref[...] += jnp.sum(a_ref[...].astype(jnp.float32) * x_ref[...],
                            axis=-1, keepdims=True)

    @pl.when(k == pl.num_programs(1) - 1)
    def _():
        # Broadcast outer product [TM,1] x [1,H_pad] on the VPU.
        h = acc_ref[...] * w1_ref[...] + b1_ref[...]
        out_ref[...] = jnp.maximum(h, 0.0).astype(out_ref.dtype)


def gcn2_kernel(a_ref, h1_ref, w2_ref, b2_ref, out_ref, acc_ref):
    """relu((A @ H1) @ w2 + b2) for one (row, K) tile.

    a: [TM, TK] bf16   h1: [TK, H_pad] bf16   w2: [H_pad, H_pad] bf16
    b2: [1, H_pad] f32   out: [TM, H_pad] bf16   acc: [TM, H_pad] f32 scratch
    """
    k = pl.program_id(1)

    @pl.when(k == 0)
    def _():
        acc_ref[...] = jnp.zeros_like(acc_ref)

    acc_ref[...] += jnp.dot(a_ref[...], h1_ref[...],
                            preferred_element_type=jnp.float32)

    @pl.when(k == pl.num_programs(1) - 1)
    def _():
        hw = jnp.dot(acc_ref[...].astype(jnp.bfloat16), w2_ref[...],
                     preferred_element_type=jnp.float32)
        out_ref[...] = jnp.maximum(hw + b2_ref[...], 0.0).astype(out_ref.dtype)


def head_kernel(p_ref, h2_ref, w3_ref, b3_ref, w4_ref, b4_ref, out_ref, acc_ref):
    """global_mean_pool (K-tiled) + fc1 (+ReLU) + fc2.

    p: [B_pad, TK] bf16   h2: [TK, H_pad] bf16   w3: [H_pad, F1_pad] bf16
    b3: [1, F1_pad] f32   w4: [1, F1_pad] f32   b4: [1,1] f32
    out: [B_pad, LANE] f32 (broadcast across lanes -> unmasked stores)
    acc: [B_pad, H_pad] f32 scratch
    """
    k = pl.program_id(0)

    @pl.when(k == 0)
    def _():
        acc_ref[...] = jnp.zeros_like(acc_ref)

    acc_ref[...] += jnp.dot(p_ref[...], h2_ref[...],
                            preferred_element_type=jnp.float32)

    @pl.when(k == pl.num_programs(0) - 1)
    def _():
        h3 = jnp.dot(acc_ref[...].astype(jnp.bfloat16), w3_ref[...],
                     preferred_element_type=jnp.float32) + b3_ref[...]
        h3 = jnp.maximum(h3, 0.0)
        val = jnp.sum(h3 * w4_ref[...], axis=-1, keepdims=True) + b4_ref[...]
        out_ref[...] = jnp.broadcast_to(val, out_ref.shape).astype(out_ref.dtype)


# ---------------------------------------------------------------------------
# Forward pass
# ---------------------------------------------------------------------------
def gnn_forward(a_hat, x, pool, params):
    (w1, b1, w2, b2, w3, b3, w4, b4) = params
    f32, bf16 = jnp.float32, jnp.bfloat16

    N = a_hat.shape[0]
    B = pool.shape[0]
    H = w1.shape[1]
    F1 = w3.shape[1]

    N_pad = _round_up(N, LANE)
    H_pad = _round_up(H, LANE)
    F1_pad = _round_up(F1, LANE)
    B_pad = _round_up(B, SUBLANE)

    # --- zero-pad operands to lane/sublane-aligned shapes (one-time XLA glue) ---
    a_p = jnp.zeros((N_pad, N_pad), bf16).at[:N, :N].set(a_hat.astype(bf16))
    x_p = jnp.zeros((1, N_pad), f32).at[0, :N].set(x.reshape(-1).astype(f32))
    p_p = jnp.zeros((B_pad, N_pad), bf16).at[:B, :N].set(pool.astype(bf16))
    w1_p = jnp.zeros((1, H_pad), f32).at[:, :H].set(w1.astype(f32).reshape(1, H))
    b1_p = jnp.zeros((1, H_pad), f32).at[:, :H].set(b1.astype(f32).reshape(1, H))
    w2_p = jnp.zeros((H_pad, H_pad), bf16).at[:H, :H].set(w2.astype(bf16))
    b2_p = jnp.zeros((1, H_pad), f32).at[:, :H].set(b2.astype(f32).reshape(1, H))
    w3_p = jnp.zeros((H_pad, F1_pad), bf16).at[:H, :F1].set(w3.astype(bf16))
    b3_p = jnp.zeros((1, F1_pad), f32).at[:, :F1].set(b3.astype(f32).reshape(1, F1))
    w4_p = jnp.zeros((1, F1_pad), f32).at[:, :F1].set(w4.astype(f32).reshape(1, F1))
    b4_p = b4.astype(f32).reshape(1, 1)

    cap = _vmem_cap_bytes()

    # ------------------- small-graph path: one fused kernel --------------------
    if N_pad <= FUSE_MAX_NPAD:
        in_bytes = (N_pad * N_pad * 2 + SUBLANE * N_pad * 4
                    + 2 * SUBLANE * H_pad * 4 + H_pad * H_pad * 2
                    + B_pad * N_pad * 2 + H_pad * F1_pad * 2
                    + 2 * SUBLANE * F1_pad * 4 + SUBLANE * LANE * 4)
        out_bytes = B_pad * LANE * 4
        temps = 6 * N_pad * H_pad * 4     # h1/agg/h2/pooled/h3 in-kernel temps
        out_pad = pl.pallas_call(
            fused_kernel,
            out_shape=jax.ShapeDtypeStruct((B_pad, LANE), f32),
            grid=(1,),
            in_specs=[
                pl.BlockSpec((N_pad, N_pad), lambda i: (0, 0)),
                pl.BlockSpec((1, N_pad), lambda i: (0, 0)),
                pl.BlockSpec((1, H_pad), lambda i: (0, 0)),
                pl.BlockSpec((1, H_pad), lambda i: (0, 0)),
                pl.BlockSpec((H_pad, H_pad), lambda i: (0, 0)),
                pl.BlockSpec((1, H_pad), lambda i: (0, 0)),
                pl.BlockSpec((B_pad, N_pad), lambda i: (0, 0)),
                pl.BlockSpec((H_pad, F1_pad), lambda i: (0, 0)),
                pl.BlockSpec((1, F1_pad), lambda i: (0, 0)),
                pl.BlockSpec((1, F1_pad), lambda i: (0, 0)),
                pl.BlockSpec((1, 1), lambda i: (0, 0)),
            ],
            out_specs=pl.BlockSpec((B_pad, LANE), lambda i: (0, 0)),
            compiler_params=pltpu.CompilerParams(
                dimension_semantics=("arbitrary",),
                vmem_limit_bytes=_vmem_limit(in_bytes, out_bytes, temps, cap)),
        )(a_p, x_p, w1_p, b1_p, w2_p, b2_p, p_p, w3_p, b3_p, w4_p, b4_p)
        return out_pad[:B, 0]   # x.view(-1)

    # ------------------- large-graph path: tiled kernels -----------------------
    TM = 256 if N_pad % 256 == 0 else 128
    TK = 512 if N_pad % 512 == 0 else (256 if N_pad % 256 == 0 else 128)
    grid_rows = N_pad // TM
    grid_k = N_pad // TK

    # GCNConv1: relu((A @ x) * w1 + b1), row x K grid, [TM,1] f32 accumulator.
    c1_in = TM * TK * 2 + SUBLANE * TK * 4 + 2 * SUBLANE * H_pad * 4
    c1_out = TM * H_pad * 2
    c1_scr = TM * LANE * 4
    h1 = pl.pallas_call(
        gcn1_kernel,
        out_shape=jax.ShapeDtypeStruct((N_pad, H_pad), bf16),
        grid=(grid_rows, grid_k),
        in_specs=[
            pl.BlockSpec((TM, TK), lambda i, k: (i, k)),      # A tile
            pl.BlockSpec((1, TK), lambda i, k: (0, k)),       # x chunk (lane-dense)
            pl.BlockSpec((1, H_pad), lambda i, k: (0, 0)),    # w1
            pl.BlockSpec((1, H_pad), lambda i, k: (0, 0)),    # b1
        ],
        out_specs=pl.BlockSpec((TM, H_pad), lambda i, k: (i, 0)),
        scratch_shapes=[pltpu.VMEM((TM, 1), jnp.float32)],
        compiler_params=pltpu.CompilerParams(
            dimension_semantics=("parallel", "arbitrary"),
            vmem_limit_bytes=_vmem_limit(c1_in, c1_out, c1_scr, cap)),
    )(a_p, x_p, w1_p, b1_p)

    # GCNConv2: relu((A @ H1) @ w2 + b2), row x K grid, [TM,H] f32 accumulator.
    c2_in = TM * TK * 2 + TK * H_pad * 2 + H_pad * H_pad * 2 + SUBLANE * H_pad * 4
    c2_out = TM * H_pad * 2
    c2_scr = TM * H_pad * 4
    h2 = pl.pallas_call(
        gcn2_kernel,
        out_shape=jax.ShapeDtypeStruct((N_pad, H_pad), bf16),
        grid=(grid_rows, grid_k),
        in_specs=[
            pl.BlockSpec((TM, TK), lambda i, k: (i, k)),      # A tile
            pl.BlockSpec((TK, H_pad), lambda i, k: (k, 0)),   # H1 K-chunk
            pl.BlockSpec((H_pad, H_pad), lambda i, k: (0, 0)),
            pl.BlockSpec((1, H_pad), lambda i, k: (0, 0)),
        ],
        out_specs=pl.BlockSpec((TM, H_pad), lambda i, k: (i, 0)),
        scratch_shapes=[pltpu.VMEM((TM, H_pad), jnp.float32)],
        compiler_params=pltpu.CompilerParams(
            dimension_semantics=("parallel", "arbitrary"),
            vmem_limit_bytes=_vmem_limit(c2_in, c2_out, c2_scr, cap)),
    )(a_p, h1, w2_p, b2_p)

    # Head: K-tiled mean pool + fc1 + fc2.
    hd_in = (B_pad * TK * 2 + TK * H_pad * 2 + H_pad * F1_pad * 2
             + 2 * SUBLANE * F1_pad * 4 + SUBLANE * LANE * 4)
    hd_out = B_pad * LANE * 4
    hd_scr = B_pad * H_pad * 4
    out_pad = pl.pallas_call(
        head_kernel,
        out_shape=jax.ShapeDtypeStruct((B_pad, LANE), f32),
        grid=(grid_k,),
        in_specs=[
            pl.BlockSpec((B_pad, TK), lambda k: (0, k)),      # pool matrix K-chunk
            pl.BlockSpec((TK, H_pad), lambda k: (k, 0)),      # H2 K-chunk
            pl.BlockSpec((H_pad, F1_pad), lambda k: (0, 0)),
            pl.BlockSpec((1, F1_pad), lambda k: (0, 0)),
            pl.BlockSpec((1, F1_pad), lambda k: (0, 0)),
            pl.BlockSpec((1, 1), lambda k: (0, 0)),
        ],
        out_specs=pl.BlockSpec((B_pad, LANE), lambda k: (0, 0)),
        scratch_shapes=[pltpu.VMEM((B_pad, H_pad), jnp.float32)],
        compiler_params=pltpu.CompilerParams(
            dimension_semantics=("arbitrary",),
            vmem_limit_bytes=_vmem_limit(hd_in, hd_out, hd_scr, cap)),
    )(p_p, h2, w3_p, b3_p, w4_p, b4_p)

    return out_pad[:B, 0]   # x.view(-1)


gnn_forward_jit = jax.jit(gnn_forward)


# ---------------------------------------------------------------------------
# Glue: dense GCN normalization + pooling operators, params, reference
# ---------------------------------------------------------------------------
def build_normalized_adjacency(edge_index, num_nodes):
    """Dense D^-1/2 (A + I) D^-1/2 with aggregation at the target node."""
    src, dst = edge_index[0], edge_index[1]
    adj = jnp.zeros((num_nodes, num_nodes), jnp.float32)
    adj = adj.at[dst, src].add(1.0)                        # A[target, source] = 1
    adj = adj + jnp.eye(num_nodes, dtype=jnp.float32)      # self-loops
    deg = adj.sum(axis=1)
    dinv = jnp.where(deg > 0, jax.lax.rsqrt(deg), 0.0)
    return dinv[:, None] * adj * dinv[None, :]


def build_mean_pool_matrix(batch, num_graphs):
    """P[b, i] = 1/count_b if batch[i] == b else 0."""
    onehot = (batch[None, :] == jnp.arange(num_graphs)[:, None]).astype(jnp.float32)
    counts = onehot.sum(axis=1, keepdims=True)
    return onehot / jnp.maximum(counts, 1.0)


def init_params(key, hidden_dim=64, fc1_dim=32):
    ks = jax.random.split(key, 8)
    scale = 0.1
    w1 = scale * jax.random.normal(ks[0], (1, hidden_dim), jnp.float32)
    b1 = scale * jax.random.normal(ks[1], (1, hidden_dim), jnp.float32)
    w2 = scale * jax.random.normal(ks[2], (hidden_dim, hidden_dim), jnp.float32)
    b2 = scale * jax.random.normal(ks[3], (1, hidden_dim), jnp.float32)
    w3 = scale * jax.random.normal(ks[4], (hidden_dim, fc1_dim), jnp.float32)
    b3 = scale * jax.random.normal(ks[5], (1, fc1_dim), jnp.float32)
    w4 = scale * jax.random.normal(ks[6], (fc1_dim, 1), jnp.float32)
    b4 = scale * jax.random.normal(ks[7], (1, 1), jnp.float32)
    return (w1, b1, w2, b2, w3, b3, w4, b4)


def reference_forward(a_hat, x, pool, params):
    """Pure-JAX f32 reference for correctness check."""
    (w1, b1, w2, b2, w3, b3, w4, b4) = params
    h1 = jnp.maximum(a_hat @ (x @ w1) + b1, 0.0)
    h2 = jnp.maximum(a_hat @ (h1 @ w2) + b2, 0.0)
    pooled = pool @ h2
    h3 = jnp.maximum(pooled @ w3 + b3, 0.0)
    return (h3 @ w4 + b4).reshape(-1)


if __name__ == "__main__":
    key = jax.random.PRNGKey(0)
    k_param, k_x1, k_x2 = jax.random.split(key, 3)
    params = init_params(k_param, hidden_dim=64, fc1_dim=32)

    def make_ring_batch(num_graphs, nodes_per_graph, kx):
        """Bidirectional ring graphs; edge_attr exists in the PyTorch data but
        is unused by the forward pass."""
        N = num_graphs * nodes_per_graph
        x = jax.random.normal(kx, (N, 1), jnp.float32)
        srcs, dsts = [], []
        for g in range(num_graphs):
            base = g * nodes_per_graph
            for i in range(nodes_per_graph):
                a = base + i
                b = base + (i + 1) % nodes_per_graph
                srcs += [a, b]
                dsts += [b, a]
        edge_index = jnp.array([srcs, dsts], dtype=jnp.int32)
        batch = jnp.repeat(jnp.arange(num_graphs, dtype=jnp.int32),
                           nodes_per_graph)
        a_hat = build_normalized_adjacency(edge_index, N)
        pool = build_mean_pool_matrix(batch, num_graphs)
        return a_hat, x, pool

    # --- test 1: 2 graphs x 8 nodes -> fused single-kernel path ---------------
    a_hat, x, pool = make_ring_batch(2, 8, k_x1)
    out = jax.block_until_ready(gnn_forward_jit(a_hat, x, pool, params))
    ref = reference_forward(a_hat, x, pool, params)
    assert out.shape == (2,)
    assert jnp.allclose(out, ref, atol=2e-2, rtol=2e-2), (out, ref)

    # --- test 2: 3 graphs x 100 nodes -> row x K tiled multi-kernel path ------
    a_hat2, x2, pool2 = make_ring_batch(3, 100, k_x2)
    out2 = jax.block_until_ready(gnn_forward_jit(a_hat2, x2, pool2, params))
    ref2 = reference_forward(a_hat2, x2, pool2, params)
    assert out2.shape == (3,)
    assert jnp.allclose(out2, ref2, atol=3e-2, rtol=3e-2), (out2, ref2)

    print("KERNEL_OK")
</pallas_src>

<mosaic_0001>
module attributes {stable_mosaic.version = 11 : i64} {
  func.func @fused_kernel(%arg0: i32, %arg1: memref<128x128xbf16, #tpu.memory_space<vmem>>, %arg2: memref<1x128xf32, #tpu.memory_space<vmem>>, %arg3: memref<1x128xf32, #tpu.memory_space<vmem>>, %arg4: memref<1x128xf32, #tpu.memory_space<vmem>>, %arg5: memref<128x128xbf16, #tpu.memory_space<vmem>>, %arg6: memref<1x128xf32, #tpu.memory_space<vmem>>, %arg7: memref<8x128xbf16, #tpu.memory_space<vmem>>, %arg8: memref<128x128xbf16, #tpu.memory_space<vmem>>, %arg9: memref<1x128xf32, #tpu.memory_space<vmem>>, %arg10: memref<1x128xf32, #tpu.memory_space<vmem>>, %arg11: memref<1x1xf32, #tpu.memory_space<vmem>>, %arg12: memref<8x128xf32, #tpu.memory_space<vmem>>) attributes {dimension_semantics = [#tpu.dimension_semantics<arbitrary>], iteration_bounds = array<i64: 1>, scalar_prefetch = 0 : i64, scratch_operands = 0 : i64, tpu.core_type = #tpu.core_type<tc>, window_params = [{pipeline_mode = #tpu.pipeline_mode<synchronous>, transform_indices = @transform_0, window_bounds = array<i64: 128, 128>}, {pipeline_mode = #tpu.pipeline_mode<synchronous>, transform_indices = @transform_1, window_bounds = array<i64: 1, 128>}, {pipeline_mode = #tpu.pipeline_mode<synchronous>, transform_indices = @transform_2, window_bounds = array<i64: 1, 128>}, {pipeline_mode = #tpu.pipeline_mode<synchronous>, transform_indices = @transform_3, window_bounds = array<i64: 1, 128>}, {pipeline_mode = #tpu.pipeline_mode<synchronous>, transform_indices = @transform_4, window_bounds = array<i64: 128, 128>}, {pipeline_mode = #tpu.pipeline_mode<synchronous>, transform_indices = @transform_5, window_bounds = array<i64: 1, 128>}, {pipeline_mode = #tpu.pipeline_mode<synchronous>, transform_indices = @transform_6, window_bounds = array<i64: 8, 128>}, {pipeline_mode = #tpu.pipeline_mode<synchronous>, transform_indices = @transform_7, window_bounds = array<i64: 128, 128>}, {pipeline_mode = #tpu.pipeline_mode<synchronous>, transform_indices = @transform_8, window_bounds = array<i64: 1, 128>}, {pipeline_mode = #tpu.pipeline_mode<synchronous>, transform_indices = @transform_9, window_bounds = array<i64: 1, 128>}, {pipeline_mode = #tpu.pipeline_mode<synchronous>, transform_indices = @transform_10, window_bounds = array<i64: 1, 1>}, {pipeline_mode = #tpu.pipeline_mode<synchronous>, transform_indices = @transform_11, window_bounds = array<i64: 8, 128>}]} {
    %c0 = arith.constant 0 : index
    %c0_0 = arith.constant 0 : index
    %0 = vector.load %arg1[%c0, %c0_0] : memref<128x128xbf16, #tpu.memory_space<vmem>>, vector<128x128xbf16>
    %1 = arith.extf %0 : vector<128x128xbf16> to vector<128x128xf32>
    %c0_1 = arith.constant 0 : index
    %c0_2 = arith.constant 0 : index
    %2 = vector.load %arg2[%c0_1, %c0_2] : memref<1x128xf32, #tpu.memory_space<vmem>>, vector<1x128xf32>
    %3 = vector.broadcast %2 : vector<1x128xf32> to vector<128x128xf32>
    %4 = arith.mulf %1, %3 : vector<128x128xf32>
    %cst = arith.constant dense<0.000000e+00> : vector<128xf32>
    %5 = vector.multi_reduction <add>, %4, %cst [1] : vector<128x128xf32> to vector<128xf32>
    %6 = vector.shape_cast %5 : vector<128xf32> to vector<128x1xf32>
    %c0_3 = arith.constant 0 : index
    %c0_4 = arith.constant 0 : index
    %7 = vector.load %arg3[%c0_3, %c0_4] : memref<1x128xf32, #tpu.memory_space<vmem>>, vector<1x128xf32>
    %8 = vector.broadcast %6 : vector<128x1xf32> to vector<128x128xf32>
    %9 = vector.broadcast %7 : vector<1x128xf32> to vector<128x128xf32>
    %10 = arith.mulf %8, %9 : vector<128x128xf32>
    %c0_5 = arith.constant 0 : index
    %c0_6 = arith.constant 0 : index
    %11 = vector.load %arg4[%c0_5, %c0_6] : memref<1x128xf32, #tpu.memory_space<vmem>>, vector<1x128xf32>
    %12 = vector.broadcast %11 : vector<1x128xf32> to vector<128x128xf32>
    %13 = arith.addf %10, %12 : vector<128x128xf32>
    %cst_7 = arith.constant 0.000000e+00 : f32
    %14 = vector.broadcast %cst_7 : f32 to vector<128x128xf32>
    %15 = arith.maximumf %13, %14 : vector<128x128xf32>
    %16 = arith.truncf %15 : vector<128x128xf32> to vector<128x128xbf16>
    %cst_8 = arith.constant dense<0.000000e+00> : vector<128x128xf32>
    %17 = tpu.matmul %0, %16, %cst_8 {dimension_numbers = #tpu.dot_dimension_numbers<[1], [0], [0], [1], [0, 0, 1, 1], [], []>} : vector<128x128xbf16>, vector<128x128xbf16>, vector<128x128xf32> -> vector<128x128xf32>
    %18 = arith.truncf %17 : vector<128x128xf32> to vector<128x128xbf16>
    %c0_9 = arith.constant 0 : index
    %c0_10 = arith.constant 0 : index
    %19 = vector.load %arg5[%c0_9, %c0_10] : memref<128x128xbf16, #tpu.memory_space<vmem>>, vector<128x128xbf16>
    %cst_11 = arith.constant dense<0.000000e+00> : vector<128x128xf32>
    %20 = tpu.matmul %18, %19, %cst_11 {dimension_numbers = #tpu.dot_dimension_numbers<[1], [0], [0], [1], [0, 0, 1, 1], [], []>} : vector<128x128xbf16>, vector<128x128xbf16>, vector<128x128xf32> -> vector<128x128xf32>
    %c0_12 = arith.constant 0 : index
    %c0_13 = arith.constant 0 : index
    %21 = vector.load %arg6[%c0_12, %c0_13] : memref<1x128xf32, #tpu.memory_space<vmem>>, vector<1x128xf32>
    %22 = vector.broadcast %21 : vector<1x128xf32> to vector<128x128xf32>
    %23 = arith.addf %20, %22 : vector<128x128xf32>
    %cst_14 = arith.constant 0.000000e+00 : f32
    %24 = vector.broadcast %cst_14 : f32 to vector<128x128xf32>
    %25 = arith.maximumf %23, %24 : vector<128x128xf32>
    %c0_15 = arith.constant 0 : index
    %c0_16 = arith.constant 0 : index
    %26 = vector.load %arg7[%c0_15, %c0_16] : memref<8x128xbf16, #tpu.memory_space<vmem>>, vector<8x128xbf16>
    %27 = arith.truncf %25 : vector<128x128xf32> to vector<128x128xbf16>
    %cst_17 = arith.constant dense<0.000000e+00> : vector<8x128xf32>
    %28 = tpu.matmul %26, %27, %cst_17 {dimension_numbers = #tpu.dot_dimension_numbers<[1], [0], [0], [1], [0, 0, 1, 1], [], []>} : vector<8x128xbf16>, vector<128x128xbf16>, vector<8x128xf32> -> vector<8x128xf32>
    %29 = arith.truncf %28 : vector<8x128xf32> to vector<8x128xbf16>
    %c0_18 = arith.constant 0 : index
    %c0_19 = arith.constant 0 : index
    %30 = vector.load %arg8[%c0_18, %c0_19] : memref<128x128xbf16, #tpu.memory_space<vmem>>, vector<128x128xbf16>
    %cst_20 = arith.constant dense<0.000000e+00> : vector<8x128xf32>
    %31 = tpu.matmul %29, %30, %cst_20 {dimension_numbers = #tpu.dot_dimension_numbers<[1], [0], [0], [1], [0, 0, 1, 1], [], []>} : vector<8x128xbf16>, vector<128x128xbf16>, vector<8x128xf32> -> vector<8x128xf32>
    %c0_21 = arith.constant 0 : index
    %c0_22 = arith.constant 0 : index
    %32 = vector.load %arg9[%c0_21, %c0_22] : memref<1x128xf32, #tpu.memory_space<vmem>>, vector<1x128xf32>
    %33 = vector.broadcast %32 : vector<1x128xf32> to vector<8x128xf32>
    %34 = arith.addf %31, %33 : vector<8x128xf32>
    %cst_23 = arith.constant 0.000000e+00 : f32
    %35 = vector.broadcast %cst_23 : f32 to vector<8x128xf32>
    %36 = arith.maximumf %34, %35 : vector<8x128xf32>
    %c0_24 = arith.constant 0 : index
    %c0_25 = arith.constant 0 : index
    %37 = vector.load %arg10[%c0_24, %c0_25] : memref<1x128xf32, #tpu.memory_space<vmem>>, vector<1x128xf32>
    %38 = vector.broadcast %37 : vector<1x128xf32> to vector<8x128xf32>
    %39 = arith.mulf %36, %38 : vector<8x128xf32>
    %cst_26 = arith.constant dense<0.000000e+00> : vector<8xf32>
    %40 = vector.multi_reduction <add>, %39, %cst_26 [1] : vector<8x128xf32> to vector<8xf32>
    %41 = vector.shape_cast %40 : vector<8xf32> to vector<8x1xf32>
    %c0_27 = arith.constant 0 : index
    %c0_28 = arith.constant 0 : index
    %42 = vector.load %arg11[%c0_27, %c0_28] : memref<1x1xf32, #tpu.memory_space<vmem>>, vector<1x1xf32>
    %43 = vector.broadcast %42 : vector<1x1xf32> to vector<8x1xf32>
    %44 = arith.addf %41, %43 : vector<8x1xf32>
    %45 = vector.shape_cast %44 : vector<8x1xf32> to vector<8x1xf32>
    %46 = vector.broadcast %45 : vector<8x1xf32> to vector<8x128xf32>
    %c0_29 = arith.constant 0 : index
    %c0_30 = arith.constant 0 : index
    %47 = vector.load %arg12[%c0_29, %c0_30] : memref<8x128xf32, #tpu.memory_space<vmem>>, vector<8x128xf32>
    tpu.vector_store %arg12[%c0_29, %c0_30], %46 {strides = array<i32>} : memref<8x128xf32, #tpu.memory_space<vmem>>, vector<8x128xf32>,
    return
  }
  func.func @transform_0(%arg0: i32) -> (i32, i32) {
    %c0_i32 = arith.constant 0 : i32
    %c0_i32_0 = arith.constant 0 : i32
    %c0_i32_1 = arith.constant 0 : i32
    return %c0_i32, %c0_i32_0 : i32, i32
  }
  func.func @transform_1(%arg0: i32) -> (i32, i32) {
    %c0_i32 = arith.constant 0 : i32
    %c0_i32_0 = arith.constant 0 : i32
    %c0_i32_1 = arith.constant 0 : i32
    return %c0_i32, %c0_i32_0 : i32, i32
  }
  func.func @transform_2(%arg0: i32) -> (i32, i32) {
    %c0_i32 = arith.constant 0 : i32
    %c0_i32_0 = arith.constant 0 : i32
    %c0_i32_1 = arith.constant 0 : i32
    return %c0_i32, %c0_i32_0 : i32, i32
  }
  func.func @transform_3(%arg0: i32) -> (i32, i32) {
    %c0_i32 = arith.constant 0 : i32
    %c0_i32_0 = arith.constant 0 : i32
    %c0_i32_1 = arith.constant 0 : i32
    return %c0_i32, %c0_i32_0 : i32, i32
  }
  func.func @transform_4(%arg0: i32) -> (i32, i32) {
    %c0_i32 = arith.constant 0 : i32
    %c0_i32_0 = arith.constant 0 : i32
    %c0_i32_1 = arith.constant 0 : i32
    return %c0_i32, %c0_i32_0 : i32, i32
  }
  func.func @transform_5(%arg0: i32) -> (i32, i32) {
    %c0_i32 = arith.constant 0 : i32
    %c0_i32_0 = arith.constant 0 : i32
    %c0_i32_1 = arith.constant 0 : i32
    return %c0_i32, %c0_i32_0 : i32, i32
  }
  func.func @transform_6(%arg0: i32) -> (i32, i32) {
    %c0_i32 = arith.constant 0 : i32
    %c0_i32_0 = arith.constant 0 : i32
    %c0_i32_1 = arith.constant 0 : i32
    return %c0_i32, %c0_i32_0 : i32, i32
  }
  func.func @transform_7(%arg0: i32) -> (i32, i32) {
    %c0_i32 = arith.constant 0 : i32
    %c0_i32_0 = arith.constant 0 : i32
    %c0_i32_1 = arith.constant 0 : i32
    return %c0_i32, %c0_i32_0 : i32, i32
  }
  func.func @transform_8(%arg0: i32) -> (i32, i32) {
    %c0_i32 = arith.constant 0 : i32
    %c0_i32_0 = arith.constant 0 : i32
    %c0_i32_1 = arith.constant 0 : i32
    return %c0_i32, %c0_i32_0 : i32, i32
  }
  func.func @transform_9(%arg0: i32) -> (i32, i32) {
    %c0_i32 = arith.constant 0 : i32
    %c0_i32_0 = arith.constant 0 : i32
    %c0_i32_1 = arith.constant 0 : i32
    return %c0_i32, %c0_i32_0 : i32, i32
  }
  func.func @transform_10(%arg0: i32) -> (i32, i32) {
    %c0_i32 = arith.constant 0 : i32
    %c0_i32_0 = arith.constant 0 : i32
    %c0_i32_1 = arith.constant 0 : i32
    return %c0_i32, %c0_i32_0 : i32, i32
  }
  func.func @transform_11(%arg0: i32) -> (i32, i32) {
    %c0_i32 = arith.constant 0 : i32
    %c0_i32_0 = arith.constant 0 : i32
    %c0_i32_1 = arith.constant 0 : i32
    return %c0_i32, %c0_i32_0 : i32, i32
  }
}

</mosaic_0001>

<llo_original>
// kernel: gnn_forward.1
$region0: #{gnn_forward.1}
  #allocation0 [shape = 'u32[]', space=smem, size = 0x4, offset = 0x4, fixed_abs, tag = 'smem constant byte address 0x4 - core index']
  #allocation1 [shape = 'u32[144,128]{1,0:T(1,128)}', space=vmem, size = 0x12000, scoped, tag = 'internal scratch']
  #allocation2 [shape = 'f32[1,1]{1,0:T(1,128)S(1)}', space=vmem, size = 0x200, scoped, tag = 'scoped memory for gnn_forward.1']
  %s0 = inlined_call_operand.vmem [shape: bf16[128,128], index: 0, kind: input, shape index: {}]
  %s1 = inlined_call_operand.vmem [shape: f32[1,128], index: 1, kind: input, shape index: {}]
  %s2 = inlined_call_operand.vmem [shape: f32[1,128], index: 2, kind: input, shape index: {}]
  %s3 = inlined_call_operand.vmem [shape: f32[1,128], index: 3, kind: input, shape index: {}]
  %s4 = inlined_call_operand.vmem [shape: bf16[128,128], index: 4, kind: input, shape index: {}]
  %s5 = inlined_call_operand.vmem [shape: f32[1,128], index: 5, kind: input, shape index: {}]
  %s6 = inlined_call_operand.vmem [shape: bf16[8,128], index: 6, kind: input, shape index: {}]
  %s7 = inlined_call_operand.vmem [shape: bf16[128,128], index: 7, kind: input, shape index: {}]
  %s8 = inlined_call_operand.vmem [shape: f32[1,128], index: 8, kind: input, shape index: {}]
  %s9 = inlined_call_operand.vmem [shape: f32[1,128], index: 9, kind: input, shape index: {}]
  %s10 = inlined_call_operand.<no memory space> [shape: f32[1,1], index: 10, kind: input, shape index: {}]
  %s11 = inlined_call_operand.vmem [shape: f32[8,128], index: 11, kind: output, shape index: {}]
  %s12 = sld [smem:[#allocation0]]
  $region54: #{gnn_forward.1} parent=0
    _
  %s14 = ssub.s32 1, %s12
  %s15 = scalar_select 0, %s14, %s12
  %v16 = vstv %s10
  %17 = vst [vmem:[#allocation2] sm:$0x1] %v16
  // Predicated region
  $region2: #{gnn_forward.1} parent=0 // pred_check
    _
  $region3: #{gnn_forward.1} parent=0 // pred_check_branch
    %19 = sbr.rel (0) target = $region5
  $region4: #{gnn_forward.1} parent=0 // pred_region
    _
  $region5: #{gnn_forward.1} parent=0 // pred_fallthru
    _
  // Predicated region
  $region6: #{gnn_forward.1} parent=0 // pred_check
    _
  $region7: #{gnn_forward.1} parent=0 // pred_check_branch
    %21 = sbr.rel (0) target = $region9
  $region8: #{gnn_forward.1} parent=0 // pred_region
    _
  $region9: #{gnn_forward.1} parent=0 // pred_fallthru
    _
  // Predicated region
  $region10: #{gnn_forward.1} parent=0 // pred_check
    _
  $region11: #{gnn_forward.1} parent=0 // pred_check_branch
    %23 = sbr.rel (0) target = $region13
  $region12: #{gnn_forward.1} parent=0 // pred_region
    _
  $region13: #{gnn_forward.1} parent=0 // pred_fallthru
    _
  // Predicated region
  $region14: #{gnn_forward.1} parent=0 // pred_check
    _
  $region15: #{gnn_forward.1} parent=0 // pred_check_branch
    %25 = sbr.rel (0) target = $region17
  $region16: #{gnn_forward.1} parent=0 // pred_region
    _
  $region17: #{gnn_forward.1} parent=0 // pred_fallthru
    _
  // Predicated region
  $region18: #{gnn_forward.1} parent=0 // pred_check
    _
  $region19: #{gnn_forward.1} parent=0 // pred_check_branch
    %27 = sbr.rel (0) target = $region21
  $region20: #{gnn_forward.1} parent=0 // pred_region
    _
  $region21: #{gnn_forward.1} parent=0 // pred_fallthru
    _
  // Predicated region
  $region22: #{gnn_forward.1} parent=0 // pred_check
    _
  $region23: #{gnn_forward.1} parent=0 // pred_check_branch
    %29 = sbr.rel (0) target = $region25
  $region24: #{gnn_forward.1} parent=0 // pred_region
    _
  $region25: #{gnn_forward.1} parent=0 // pred_fallthru
    _
  // Predicated region
  $region26: #{gnn_forward.1} parent=0 // pred_check
    _
  $region27: #{gnn_forward.1} parent=0 // pred_check_branch
    %31 = sbr.rel (0) target = $region29
  $region28: #{gnn_forward.1} parent=0 // pred_region
    _
  $region29: #{gnn_forward.1} parent=0 // pred_fallthru
    _
  // Predicated region
  $region30: #{gnn_forward.1} parent=0 // pred_check
    _
  $region31: #{gnn_forward.1} parent=0 // pred_check_branch
    %33 = sbr.rel (0) target = $region33
  $region32: #{gnn_forward.1} parent=0 // pred_region
    _
  $region33: #{gnn_forward.1} parent=0 // pred_fallthru
    _
  // Predicated region
  $region34: #{gnn_forward.1} parent=0 // pred_check
    _
  $region35: #{gnn_forward.1} parent=0 // pred_check_branch
    %35 = sbr.rel (0) target = $region37
  $region36: #{gnn_forward.1} parent=0 // pred_region
    _
  $region37: #{gnn_forward.1} parent=0 // pred_fallthru
    _
  // Predicated region
  $region38: #{gnn_forward.1} parent=0 // pred_check
    _
  $region39: #{gnn_forward.1} parent=0 // pred_check_branch
    %37 = sbr.rel (0) target = $region41
  $region40: #{gnn_forward.1} parent=0 // pred_region
    _
  $region41: #{gnn_forward.1} parent=0 // pred_fallthru
    _
  // Predicated region
  $region42: #{gnn_forward.1} parent=0 // pred_check
    _
  $region43: #{gnn_forward.1} parent=0 // pred_check_branch
    %39 = sbr.rel (0) target = $region45
  $region44: #{gnn_forward.1} parent=0 // pred_region
    _
  $region45: #{gnn_forward.1} parent=0 // pred_fallthru
    _
  %v41 = vld [vmem:[%s0] sm:$0xf]
  %v42 = vld [vmem:[%s0 + $0x4] sm:$0xf]
  %v43 = vld [vmem:[%s0 + $0x8] sm:$0xf]
  %v44 = vld [vmem:[%s0 + $0xc] sm:$0xf]
  %v45 = vld [vmem:[%s0 + $0x10] sm:$0xf]
  %v46 = vld [vmem:[%s0 + $0x14] sm:$0xf]
  %v47 = vld [vmem:[%s0 + $0x18] sm:$0xf]
  %v48 = vld [vmem:[%s0 + $0x1c] sm:$0xf]
  %v49 = vld [vmem:[%s0 + $0x20] sm:$0xf]
  %v50 = vld [vmem:[%s0 + $0x24] sm:$0xf]
  %v51 = vld [vmem:[%s0 + $0x28] sm:$0xf]
  %v52 = vld [vmem:[%s0 + $0x2c] sm:$0xf]
  %v53 = vld [vmem:[%s0 + $0x30] sm:$0xf]
  %v54 = vld [vmem:[%s0 + $0x34] sm:$0xf]
  %v55 = vld [vmem:[%s0 + $0x38] sm:$0xf]
  %v56 = vld [vmem:[%s0 + $0x3c] sm:$0xf]
  %v57 = vunpack.c.l.bf16 %v41
  %v58 = vunpack.c.l.bf16 %v42
  %v59 = vunpack.c.l.bf16 %v43
  %v60 = vunpack.c.l.bf16 %v44
  %v61 = vunpack.c.l.bf16 %v45
  %v62 = vunpack.c.l.bf16 %v46
  %v63 = vunpack.c.l.bf16 %v47
  %v64 = vunpack.c.l.bf16 %v48
  %v65 = vunpack.c.l.bf16 %v49
  %v66 = vunpack.c.l.bf16 %v50
  %v67 = vunpack.c.l.bf16 %v51
  %v68 = vunpack.c.l.bf16 %v52
  %v69 = vunpack.c.l.bf16 %v53
  %v70 = vunpack.c.l.bf16 %v54
  %v71 = vunpack.c.l.bf16 %v55
  %v72 = vunpack.c.l.bf16 %v56
  %v73 = vld [vmem:[%s1] sm:$0x1]
  %v75 = vlaneseq
  %v76 = vshrl.u32 %v75, 7
  %v77 = vsub.s32 0, %v76
  %v78 = vrot.slane %v73, %v77
  %v80 = vmul.f32 %v57, %v78
  %v81 = vmul.f32 %v58, %v78
  %v82 = vmul.f32 %v59, %v78
  %v83 = vmul.f32 %v60, %v78
  %v84 = vmul.f32 %v61, %v78
  %v85 = vmul.f32 %v62, %v78
  %v86 = vmul.f32 %v63, %v78
  %v87 = vmul.f32 %v64, %v78
  %v88 = vmul.f32 %v65, %v78
  %v89 = vmul.f32 %v66, %v78
  %v90 = vmul.f32 %v67, %v78
  %v91 = vmul.f32 %v68, %v78
  %v92 = vmul.f32 %v69, %v78
  %v93 = vmul.f32 %v70, %v78
  %v94 = vmul.f32 %v71, %v78
  %v95 = vmul.f32 %v72, %v78
  %96 = vadd.xlane.f32.xlu0 %v80
  %v97 = vpop.xlane.xlu0 %96
  %98 = vadd.xlane.f32.xlu0 %v81
  %v99 = vpop.xlane.xlu0 %98
  %100 = vadd.xlane.f32.xlu0 %v82
  %v101 = vpop.xlane.xlu0 %100
  %102 = vadd.xlane.f32.xlu0 %v83
  %v103 = vpop.xlane.xlu0 %102
  %104 = vadd.xlane.f32.xlu0 %v84
  %v105 = vpop.xlane.xlu0 %104
  %106 = vadd.xlane.f32.xlu0 %v85
  %v107 = vpop.xlane.xlu0 %106
  %108 = vadd.xlane.f32.xlu0 %v86
  %v109 = vpop.xlane.xlu0 %108
  %110 = vadd.xlane.f32.xlu0 %v87
  %v111 = vpop.xlane.xlu0 %110
  %112 = vadd.xlane.f32.xlu0 %v88
  %v113 = vpop.xlane.xlu0 %112
  %114 = vadd.xlane.f32.xlu0 %v89
  %v115 = vpop.xlane.xlu0 %114
  %116 = vadd.xlane.f32.xlu0 %v90
  %v117 = vpop.xlane.xlu0 %116
  %118 = vadd.xlane.f32.xlu0 %v91
  %v119 = vpop.xlane.xlu0 %118
  %120 = vadd.xlane.f32.xlu0 %v92
  %v121 = vpop.xlane.xlu0 %120
  %122 = vadd.xlane.f32.xlu0 %v93
  %v123 = vpop.xlane.xlu0 %122
  %124 = vadd.xlane.f32.xlu0 %v94
  %v125 = vpop.xlane.xlu0 %124
  %126 = vadd.xlane.f32.xlu0 %v95
  %v127 = vpop.xlane.xlu0 %126
  %v128 = vld [vmem:[%s2] sm:$0x1]
  %v130 = vlaneseq
  %v131 = vshrl.u32 %v130, 7
  %v132 = vsub.s32 0, %v131
  %v133 = vrot.slane %v128, %v132
  %v135 = vmul.f32 %v97, %v133
  %v136 = vmul.f32 %v99, %v133
  %v137 = vmul.f32 %v101, %v133
  %v138 = vmul.f32 %v103, %v133
  %v139 = vmul.f32 %v105, %v133
  %v140 = vmul.f32 %v107, %v133
  %v141 = vmul.f32 %v109, %v133
  %v142 = vmul.f32 %v111, %v133
  %v143 = vmul.f32 %v113, %v133
  %v144 = vmul.f32 %v115, %v133
  %v145 = vmul.f32 %v117, %v133
  %v146 = vmul.f32 %v119, %v133
  %v147 = vmul.f32 %v121, %v133
  %v148 = vmul.f32 %v123, %v133
  %v149 = vmul.f32 %v125, %v133
  %v150 = vmul.f32 %v127, %v133
  %v151 = vld [vmem:[%s3] sm:$0x1]
  %v153 = vlaneseq
  %v154 = vshrl.u32 %v153, 7
  %v155 = vsub.s32 0, %v154
  %v156 = vrot.slane %v151, %v155
  %v158 = vadd.f32 %v135, %v156
  %v159 = vadd.f32 %v136, %v156
  %v160 = vadd.f32 %v137, %v156
  %v161 = vadd.f32 %v138, %v156
  %v162 = vadd.f32 %v139, %v156
  %v163 = vadd.f32 %v140, %v156
  %v164 = vadd.f32 %v141, %v156
  %v165 = vadd.f32 %v142, %v156
  %v166 = vadd.f32 %v143, %v156
  %v167 = vadd.f32 %v144, %v156
  %v168 = vadd.f32 %v145, %v156
  %v169 = vadd.f32 %v146, %v156
  %v170 = vadd.f32 %v147, %v156
  %v171 = vadd.f32 %v148, %v156
  %v172 = vadd.f32 %v149, %v156
  %v173 = vadd.f32 %v150, %v156
  %v174 = vmax.f32 %v158, 0.0
  %v175 = vmax.f32 %v159, 0.0
  %v176 = vmax.f32 %v160, 0.0
  %v177 = vmax.f32 %v161, 0.0
  %v178 = vmax.f32 %v162, 0.0
  %v179 = vmax.f32 %v163, 0.0
  %v180 = vmax.f32 %v164, 0.0
  %v181 = vmax.f32 %v165, 0.0
  %v182 = vmax.f32 %v166, 0.0
  %v183 = vmax.f32 %v167, 0.0
  %v184 = vmax.f32 %v168, 0.0
  %v185 = vmax.f32 %v169, 0.0
  %v186 = vmax.f32 %v170, 0.0
  %v187 = vmax.f32 %v171, 0.0
  %v188 = vmax.f32 %v172, 0.0
  %v189 = vmax.f32 %v173, 0.0
  %v190 = vpack.c.bf16 %v175, %v174
  %v191 = vpack.c.bf16 %v177, %v176
  %v192 = vpack.c.bf16 %v179, %v178
  %v193 = vpack.c.bf16 %v181, %v180
  %v194 = vpack.c.bf16 %v183, %v182
  %v195 = vpack.c.bf16 %v185, %v184
  %v196 = vpack.c.bf16 %v187, %v186
  %v197 = vpack.c.bf16 %v189, %v188
  %v214 = vunpack.c.l.b16 %v41
  %v215 = vunpack.c.l.b16 %v42
  %v216 = vunpack.c.l.b16 %v43
  %v217 = vunpack.c.l.b16 %v44
  %v218 = vunpack.c.l.b16 %v45
  %v219 = vunpack.c.l.b16 %v46
  %v220 = vunpack.c.l.b16 %v47
  %v221 = vunpack.c.l.b16 %v48
  %v222 = vunpack.c.l.b16 %v49
  %v223 = vunpack.c.l.b16 %v50
  %v224 = vunpack.c.l.b16 %v51
  %v225 = vunpack.c.l.b16 %v52
  %v226 = vunpack.c.l.b16 %v53
  %v227 = vunpack.c.l.b16 %v54
  %v228 = vunpack.c.l.b16 %v55
  %v229 = vunpack.c.l.b16 %v56
  %v230 = vpack.c.b16 %v215, %v214
  %v231 = vpack.c.b16 %v217, %v216
  %v232 = vpack.c.b16 %v219, %v218
  %v233 = vpack.c.b16 %v221, %v220
  %v234 = vpack.c.b16 %v223, %v222
  %v235 = vpack.c.b16 %v225, %v224
  %v236 = vpack.c.b16 %v227, %v226
  %v237 = vpack.c.b16 %v229, %v228
  %246 = vmatprep.subr.bf16.mxu0 0
  %247 = vmatpush1.bf16.msra.mxu0 %v190
  %248 = vmatprep.subr.bf16.mxu0 0
  %249 = vmatpush1.bf16.msra.mxu0 %v191
  %250 = vmatprep.subr.bf16.mxu0 0
  %251 = vmatpush1.bf16.msra.mxu0 %v192
  %252 = vmatprep.subr.bf16.mxu0 0
  %253 = vmatpush1.bf16.msra.mxu0 %v193
  %254 = vmatprep.subr.bf16.mxu0 0
  %255 = vmatpush1.bf16.msra.mxu0 %v194
  %256 = vmatprep.subr.bf16.mxu0 0
  %257 = vmatpush1.bf16.msra.mxu0 %v195
  %258 = vmatprep.subr.bf16.mxu0 0
  %259 = vmatpush1.bf16.msra.mxu0 %v196
  %260 = vmatprep.subr.bf16.mxu0 0
  %261 = vmatpush1.bf16.msra.mxu0 %v197
  %262 = vmatprep.subr.bf16.mxu0 0
  %263 = vmatpush1.bf16.msra.mxu0 0
  %264 = vmatprep.subr.bf16.mxu0 0
  %265 = vmatpush1.bf16.msra.mxu0 0
  %266 = vmatprep.subr.bf16.mxu0 0
  %267 = vmatpush1.bf16.msra.mxu0 0
  %268 = vmatprep.subr.bf16.mxu0 0
  %269 = vmatpush1.bf16.msra.mxu0 0
  %270 = vmatprep.subr.bf16.mxu0 0
  %271 = vmatpush1.bf16.msra.mxu0 0
  %272 = vmatprep.subr.bf16.mxu0 0
  %273 = vmatpush1.bf16.msra.mxu0 0
  %274 = vmatprep.subr.bf16.mxu0 0
  %275 = vmatpush1.bf16.msra.mxu0 0
  %276 = vmatprep.subr.bf16.mxu0 0
  %277 = vmatpush1.bf16.msra.mxu0 0
  %278 = vmatprep.mubr.bf16.mxu0 0
  %279 = vmatmul.mubr.bf16.gmra.mrb[0].mxu0 %v230
  %v280 = vpop.f32.mrb[0].mxu0
  %v281 = vadd.f32 0.0, %v280
  %v282 = vpop.f32.mrb[0].mxu0
  %v283 = vpop.f32.mrb[0].mxu0
  %v284 = vadd.f32 0.0, %v283
  %v285 = vpop.f32.mrb[0].mxu0
  %286 = vmatprep.mubr.bf16.mxu0 0
  %287 = vmatmul.mubr.bf16.gmra.mrb[0].mxu0 %v231
  %v288 = vpop.f32.mrb[0].mxu0
  %v289 = vadd.f32 0.0, %v288
  %v290 = vpop.f32.mrb[0].mxu0
  %v291 = vpop.f32.mrb[0].mxu0
  %v292 = vadd.f32 0.0, %v291
  %v293 = vpop.f32.mrb[0].mxu0
  %294 = vmatprep.mubr.bf16.mxu0 0
  %295 = vmatmul.mubr.bf16.gmra.mrb[0].mxu0 %v232
  %v296 = vpop.f32.mrb[0].mxu0
  %v297 = vadd.f32 0.0, %v296
  %v298 = vpop.f32.mrb[0].mxu0
  %v299 = vpop.f32.mrb[0].mxu0
  %v300 = vadd.f32 0.0, %v299
  %v301 = vpop.f32.mrb[0].mxu0
  %302 = vmatprep.mubr.bf16.mxu0 0
  %303 = vmatmul.mubr.bf16.gmra.mrb[0].mxu0 %v233
  %v304 = vpop.f32.mrb[0].mxu0
  %v305 = vadd.f32 0.0, %v304
  %v306 = vpop.f32.mrb[0].mxu0
  %v307 = vpop.f32.mrb[0].mxu0
  %v308 = vadd.f32 0.0, %v307
  %v309 = vpop.f32.mrb[0].mxu0
  %310 = vmatprep.mubr.bf16.mxu0 0
  %311 = vmatmul.mubr.bf16.gmra.mrb[0].mxu0 %v234
  %v312 = vpop.f32.mrb[0].mxu0
  %v313 = vadd.f32 0.0, %v312
  %v314 = vpop.f32.mrb[0].mxu0
  %v315 = vpop.f32.mrb[0].mxu0
  %v316 = vadd.f32 0.0, %v315
  %v317 = vpop.f32.mrb[0].mxu0
  %318 = vmatprep.mubr.bf16.mxu0 0
  %319 = vmatmul.mubr.bf16.gmra.mrb[0].mxu0 %v235
  %v320 = vpop.f32.mrb[0].mxu0
  %v321 = vadd.f32 0.0, %v320
  %v322 = vpop.f32.mrb[0].mxu0
  %v323 = vpop.f32.mrb[0].mxu0
  %v324 = vadd.f32 0.0, %v323
  %v325 = vpop.f32.mrb[0].mxu0
  %326 = vmatprep.mubr.bf16.mxu0 0
  %327 = vmatmul.mubr.bf16.gmra.mrb[0].mxu0 %v236
  %v328 = vpop.f32.mrb[0].mxu0
  %v329 = vadd.f32 0.0, %v328
  %v330 = vpop.f32.mrb[0].mxu0
  %v331 = vpop.f32.mrb[0].mxu0
  %v332 = vadd.f32 0.0, %v331
  %v333 = vpop.f32.mrb[0].mxu0
  %334 = vmatprep.mubr.bf16.mxu0 0
  %335 = vmatmul.mubr.bf16.gmra.mrb[0].mxu0 %v237
  %v336 = vpop.f32.mrb[0].mxu0
  %v337 = vadd.f32 0.0, %v336
  %v338 = vpop.f32.mrb[0].mxu0
  %v339 = vpop.f32.mrb[0].mxu0
  %v340 = vadd.f32 0.0, %v339
  %v341 = vpop.f32.mrb[0].mxu0
  %342 = vdwg.mxu0
  %v343 = vpack.c.bf16 %v284, %v281
  %v344 = vpack.c.bf16 %v292, %v289
  %v345 = vpack.c.bf16 %v300, %v297
  %v346 = vpack.c.bf16 %v308, %v305
  %v347 = vpack.c.bf16 %v316, %v313
  %v348 = vpack.c.bf16 %v324, %v321
  %v349 = vpack.c.bf16 %v332, %v329
  %v350 = vpack.c.bf16 %v340, %v337
  %v351 = vld [vmem:[%s4] sm:$0xf]
  %v352 = vld [vmem:[%s4 + $0x4] sm:$0xf]
  %v353 = vld [vmem:[%s4 + $0x8] sm:$0xf]
  %v354 = vld [vmem:[%s4 + $0xc] sm:$0xf]
  %v355 = vld [vmem:[%s4 + $0x10] sm:$0xf]
  %v356 = vld [vmem:[%s4 + $0x14] sm:$0xf]
  %v357 = vld [vmem:[%s4 + $0x18] sm:$0xf]
  %v358 = vld [vmem:[%s4 + $0x1c] sm:$0xf]
  %v359 = vld [vmem:[%s4 + $0x20] sm:$0xf]
  %v360 = vld [vmem:[%s4 + $0x24] sm:$0xf]
  %v361 = vld [vmem:[%s4 + $0x28] sm:$0xf]
  %v362 = vld [vmem:[%s4 + $0x2c] sm:$0xf]
  %v363 = vld [vmem:[%s4 + $0x30] sm:$0xf]
  %v364 = vld [vmem:[%s4 + $0x34] sm:$0xf]
  %v365 = vld [vmem:[%s4 + $0x38] sm:$0xf]
  %v366 = vld [vmem:[%s4 + $0x3c] sm:$0xf]
  %v367 = vld [vmem:[%s5] sm:$0x1]
  %v369 = vlaneseq
  %v370 = vshrl.u32 %v369, 7
  %v371 = vsub.s32 0, %v370
  %v372 = vrot.slane %v367, %v371
  %v390 = vunpack.c.l.b16 %v351
  %v391 = vunpack.c.l.b16 %v352
  %v392 = vunpack.c.l.b16 %v353
  %v393 = vunpack.c.l.b16 %v354
  %v394 = vunpack.c.l.b16 %v355
  %v395 = vunpack.c.l.b16 %v356
  %v396 = vunpack.c.l.b16 %v357
  %v397 = vunpack.c.l.b16 %v358
  %v398 = vunpack.c.l.b16 %v359
  %v399 = vunpack.c.l.b16 %v360
  %v400 = vunpack.c.l.b16 %v361
  %v401 = vunpack.c.l.b16 %v362
  %v402 = vunpack.c.l.b16 %v363
  %v403 = vunpack.c.l.b16 %v364
  %v404 = vunpack.c.l.b16 %v365
  %v405 = vunpack.c.l.b16 %v366
  %v406 = vpack.c.b16 %v391, %v390
  %v407 = vpack.c.b16 %v393, %v392
  %v408 = vpack.c.b16 %v395, %v394
  %v409 = vpack.c.b16 %v397, %v396
  %v410 = vpack.c.b16 %v399, %v398
  %v411 = vpack.c.b16 %v401, %v400
  %v412 = vpack.c.b16 %v403, %v402
  %v413 = vpack.c.b16 %v405, %v404
  %422 = vmatprep.subr.bf16.mxu0 0
  %423 = vmatpush1.bf16.msra.mxu0 %v406
  %424 = vmatprep.subr.bf16.mxu0 0
  %425 = vmatpush1.bf16.msra.mxu0 %v407
  %426 = vmatprep.subr.bf16.mxu0 0
  %427 = vmatpush1.bf16.msra.mxu0 %v408
  %428 = vmatprep.subr.bf16.mxu0 0
  %429 = vmatpush1.bf16.msra.mxu0 %v409
  %430 = vmatprep.subr.bf16.mxu0 0
  %431 = vmatpush1.bf16.msra.mxu0 %v410
  %432 = vmatprep.subr.bf16.mxu0 0
  %433 = vmatpush1.bf16.msra.mxu0 %v411
  %434 = vmatprep.subr.bf16.mxu0 0
  %435 = vmatpush1.bf16.msra.mxu0 %v412
  %436 = vmatprep.subr.bf16.mxu0 0
  %437 = vmatpush1.bf16.msra.mxu0 %v413
  %438 = vmatprep.subr.bf16.mxu0 0
  %439 = vmatpush1.bf16.msra.mxu0 0
  %440 = vmatprep.subr.bf16.mxu0 0
  %441 = vmatpush1.bf16.msra.mxu0 0
  %442 = vmatprep.subr.bf16.mxu0 0
  %443 = vmatpush1.bf16.msra.mxu0 0
  %444 = vmatprep.subr.bf16.mxu0 0
  %445 = vmatpush1.bf16.msra.mxu0 0
  %446 = vmatprep.subr.bf16.mxu0 0
  %447 = vmatpush1.bf16.msra.mxu0 0
  %448 = vmatprep.subr.bf16.mxu0 0
  %449 = vmatpush1.bf16.msra.mxu0 0
  %450 = vmatprep.subr.bf16.mxu0 0
  %451 = vmatpush1.bf16.msra.mxu0 0
  %452 = vmatprep.subr.bf16.mxu0 0
  %453 = vmatpush1.bf16.msra.mxu0 0
  %454 = vmatprep.mubr.bf16.mxu0 0
  %455 = vmatmul.mubr.bf16.gmra.mrb[0].mxu0 %v343
  %v456 = vpop.f32.mrb[0].mxu0
  %v457 = vadd.f32 %v372, %v456
  %v458 = vpop.f32.mrb[0].mxu0
  %v459 = vpop.f32.mrb[0].mxu0
  %v460 = vadd.f32 %v372, %v459
  %v461 = vpop.f32.mrb[0].mxu0
  %462 = vmatprep.mubr.bf16.mxu0 0
  %463 = vmatmul.mubr.bf16.gmra.mrb[0].mxu0 %v344
  %v464 = vpop.f32.mrb[0].mxu0
  %v465 = vadd.f32 %v372, %v464
  %v466 = vpop.f32.mrb[0].mxu0
  %v467 = vpop.f32.mrb[0].mxu0
  %v468 = vadd.f32 %v372, %v467
  %v469 = vpop.f32.mrb[0].mxu0
  %470 = vmatprep.mubr.bf16.mxu0 0
  %471 = vmatmul.mubr.bf16.gmra.mrb[0].mxu0 %v345
  %v472 = vpop.f32.mrb[0].mxu0
  %v473 = vadd.f32 %v372, %v472
  %v474 = vpop.f32.mrb[0].mxu0
  %v475 = vpop.f32.mrb[0].mxu0
  %v476 = vadd.f32 %v372, %v475
  %v477 = vpop.f32.mrb[0].mxu0
  %478 = vmatprep.mubr.bf16.mxu0 0
  %479 = vmatmul.mubr.bf16.gmra.mrb[0].mxu0 %v346
  %v480 = vpop.f32.mrb[0].mxu0
  %v481 = vadd.f32 %v372, %v480
  %v482 = vpop.f32.mrb[0].mxu0
  %v483 = vpop.f32.mrb[0].mxu0
  %v484 = vadd.f32 %v372, %v483
  %v485 = vpop.f32.mrb[0].mxu0
  %486 = vmatprep.mubr.bf16.mxu0 0
  %487 = vmatmul.mubr.bf16.gmra.mrb[0].mxu0 %v347
  %v488 = vpop.f32.mrb[0].mxu0
  %v489 = vadd.f32 %v372, %v488
  %v490 = vpop.f32.mrb[0].mxu0
  %v491 = vpop.f32.mrb[0].mxu0
  %v492 = vadd.f32 %v372, %v491
  %v493 = vpop.f32.mrb[0].mxu0
  %494 = vmatprep.mubr.bf16.mxu0 0
  %495 = vmatmul.mubr.bf16.gmra.mrb[0].mxu0 %v348
  %v496 = vpop.f32.mrb[0].mxu0
  %v497 = vadd.f32 %v372, %v496
  %v498 = vpop.f32.mrb[0].mxu0
  %v499 = vpop.f32.mrb[0].mxu0
  %v500 = vadd.f32 %v372, %v499
  %v501 = vpop.f32.mrb[0].mxu0
  %502 = vmatprep.mubr.bf16.mxu0 0
  %503 = vmatmul.mubr.bf16.gmra.mrb[0].mxu0 %v349
  %v504 = vpop.f32.mrb[0].mxu0
  %v505 = vadd.f32 %v372, %v504
  %v506 = vpop.f32.mrb[0].mxu0
  %v507 = vpop.f32.mrb[0].mxu0
  %v508 = vadd.f32 %v372, %v507
  %v509 = vpop.f32.mrb[0].mxu0
  %510 = vmatprep.mubr.bf16.mxu0 0
  %511 = vmatmul.mubr.bf16.gmra.mrb[0].mxu0 %v350
  %v512 = vpop.f32.mrb[0].mxu0
  %v513 = vadd.f32 %v372, %v512
  %v514 = vpop.f32.mrb[0].mxu0
  %v515 = vpop.f32.mrb[0].mxu0
  %v516 = vadd.f32 %v372, %v515
  %v517 = vpop.f32.mrb[0].mxu0
  %518 = vdwg.mxu0
  %v519 = vmax.f32 %v457, 0.0
  %v520 = vmax.f32 %v460, 0.0
  %v521 = vmax.f32 %v465, 0.0
  %v522 = vmax.f32 %v468, 0.0
  %v523 = vmax.f32 %v473, 0.0
  %v524 = vmax.f32 %v476, 0.0
  %v525 = vmax.f32 %v481, 0.0
  %v526 = vmax.f32 %v484, 0.0
  %v527 = vmax.f32 %v489, 0.0
  %v528 = vmax.f32 %v492, 0.0
  %v529 = vmax.f32 %v497, 0.0
  %v530 = vmax.f32 %v500, 0.0
  %v531 = vmax.f32 %v505, 0.0
  %v532 = vmax.f32 %v508, 0.0
  %v533 = vmax.f32 %v513, 0.0
  %v534 = vmax.f32 %v516, 0.0
  %v535 = vld [vmem:[%s6] sm:$0xf]
  %v536 = vpack.c.bf16 %v520, %v519
  %v537 = vpack.c.bf16 %v522, %v521
  %v538 = vpack.c.bf16 %v524, %v523
  %v539 = vpack.c.bf16 %v526, %v525
  %v540 = vpack.c.bf16 %v528, %v527
  %v541 = vpack.c.bf16 %v530, %v529
  %v542 = vpack.c.bf16 %v532, %v531
  %v543 = vpack.c.bf16 %v534, %v533
  %544 = vmatprep.subr.bf16.mxu0 0
  %545 = vmatpush1.bf16.msra.mxu0 %v536
  %546 = vmatprep.subr.bf16.mxu0 0
  %547 = vmatpush1.bf16.msra.mxu0 %v537
  %548 = vmatprep.subr.bf16.mxu0 0
  %549 = vmatpush1.bf16.msra.mxu0 %v538
  %550 = vmatprep.subr.bf16.mxu0 0
  %551 = vmatpush1.bf16.msra.mxu0 %v539
  %552 = vmatprep.subr.bf16.mxu0 0
  %553 = vmatpush1.bf16.msra.mxu0 %v540
  %554 = vmatprep.subr.bf16.mxu0 0
  %555 = vmatpush1.bf16.msra.mxu0 %v541
  %556 = vmatprep.subr.bf16.mxu0 0
  %557 = vmatpush1.bf16.msra.mxu0 %v542
  %558 = vmatprep.subr.bf16.mxu0 0
  %559 = vmatpush1.bf16.msra.mxu0 %v543
  %560 = vmatprep.subr.bf16.mxu0 0
  %561 = vmatpush1.bf16.msra.mxu0 0
  %562 = vmatprep.subr.bf16.mxu0 0
  %563 = vmatpush1.bf16.msra.mxu0 0
  %564 = vmatprep.subr.bf16.mxu0 0
  %565 = vmatpush1.bf16.msra.mxu0 0
  %566 = vmatprep.subr.bf16.mxu0 0
  %567 = vmatpush1.bf16.msra.mxu0 0
  %568 = vmatprep.subr.bf16.mxu0 0
  %569 = vmatpush1.bf16.msra.mxu0 0
  %570 = vmatprep.subr.bf16.mxu0 0
  %571 = vmatpush1.bf16.msra.mxu0 0
  %572 = vmatprep.subr.bf16.mxu0 0
  %573 = vmatpush1.bf16.msra.mxu0 0
  %574 = vmatprep.subr.bf16.mxu0 0
  %575 = vmatpush1.bf16.msra.mxu0 0
  %576 = vmatprep.mubr.bf16.mxu0 0
  %577 = vmatmul.mubr.bf16.gmra.mrb[0].mxu0 %v535
  %v578 = vpop.f32.mrb[0].mxu0
  %v579 = vadd.f32 0.0, %v578
  %v580 = vpop.f32.mrb[0].mxu0
  %v581 = vpop.f32.mrb[0].mxu0
  %v582 = vpop.f32.mrb[0].mxu0
  %583 = vdwg.mxu0
  %v584 = vpack.c.bf16 %v579, %v579
  %v585 = vld [vmem:[%s7] sm:$0xf]
  %v586 = vld [vmem:[%s7 + $0x4] sm:$0xf]
  %v587 = vld [vmem:[%s7 + $0x8] sm:$0xf]
  %v588 = vld [vmem:[%s7 + $0xc] sm:$0xf]
  %v589 = vld [vmem:[%s7 + $0x10] sm:$0xf]
  %v590 = vld [vmem:[%s7 + $0x14] sm:$0xf]
  %v591 = vld [vmem:[%s7 + $0x18] sm:$0xf]
  %v592 = vld [vmem:[%s7 + $0x1c] sm:$0xf]
  %v593 = vld [vmem:[%s7 + $0x20] sm:$0xf]
  %v594 = vld [vmem:[%s7 + $0x24] sm:$0xf]
  %v595 = vld [vmem:[%s7 + $0x28] sm:$0xf]
  %v596 = vld [vmem:[%s7 + $0x2c] sm:$0xf]
  %v597 = vld [vmem:[%s7 + $0x30] sm:$0xf]
  %v598 = vld [vmem:[%s7 + $0x34] sm:$0xf]
  %v599 = vld [vmem:[%s7 + $0x38] sm:$0xf]
  %v600 = vld [vmem:[%s7 + $0x3c] sm:$0xf]
  %v601 = vld [vmem:[%s8] sm:$0x1]
  %v603 = vlaneseq
  %v604 = vshrl.u32 %v603, 7
  %v605 = vsub.s32 0, %v604
  %v606 = vrot.slane %v601, %v605
  %v624 = vunpack.c.l.b16 %v585
  %v625 = vunpack.c.l.b16 %v586
  %v626 = vunpack.c.l.b16 %v587
  %v627 = vunpack.c.l.b16 %v588
  %v628 = vunpack.c.l.b16 %v589
  %v629 = vunpack.c.l.b16 %v590
  %v630 = vunpack.c.l.b16 %v591
  %v631 = vunpack.c.l.b16 %v592
  %v632 = vunpack.c.l.b16 %v593
  %v633 = vunpack.c.l.b16 %v594
  %v634 = vunpack.c.l.b16 %v595
  %v635 = vunpack.c.l.b16 %v596
  %v636 = vunpack.c.l.b16 %v597
  %v637 = vunpack.c.l.b16 %v598
  %v638 = vunpack.c.l.b16 %v599
  %v639 = vunpack.c.l.b16 %v600
  %v640 = vpack.c.b16 %v625, %v624
  %v641 = vpack.c.b16 %v627, %v626
  %v642 = vpack.c.b16 %v629, %v628
  %v643 = vpack.c.b16 %v631, %v630
  %v644 = vpack.c.b16 %v633, %v632
  %v645 = vpack.c.b16 %v635, %v634
  %v646 = vpack.c.b16 %v637, %v636
  %v647 = vpack.c.b16 %v639, %v638
  %656 = vmatprep.subr.bf16.mxu0 0
  %657 = vmatpush1.bf16.msra.mxu0 %v640
  %658 = vmatprep.subr.bf16.mxu0 0
  %659 = vmatpush1.bf16.msra.mxu0 %v641
  %660 = vmatprep.subr.bf16.mxu0 0
  %661 = vmatpush1.bf16.msra.mxu0 %v642
  %662 = vmatprep.subr.bf16.mxu0 0
  %663 = vmatpush1.bf16.msra.mxu0 %v643
  %664 = vmatprep.subr.bf16.mxu0 0
  %665 = vmatpush1.bf16.msra.mxu0 %v644
  %666 = vmatprep.subr.bf16.mxu0 0
  %667 = vmatpush1.bf16.msra.mxu0 %v645
  %668 = vmatprep.subr.bf16.mxu0 0
  %669 = vmatpush1.bf16.msra.mxu0 %v646
  %670 = vmatprep.subr.bf16.mxu0 0
  %671 = vmatpush1.bf16.msra.mxu0 %v647
  %672 = vmatprep.subr.bf16.mxu0 0
  %673 = vmatpush1.bf16.msra.mxu0 0
  %674 = vmatprep.subr.bf16.mxu0 0
  %675 = vmatpush1.bf16.msra.mxu0 0
  %676 = vmatprep.subr.bf16.mxu0 0
  %677 = vmatpush1.bf16.msra.mxu0 0
  %678 = vmatprep.subr.bf16.mxu0 0
  %679 = vmatpush1.bf16.msra.mxu0 0
  %680 = vmatprep.subr.bf16.mxu0 0
  %681 = vmatpush1.bf16.msra.mxu0 0
  %682 = vmatprep.subr.bf16.mxu0 0
  %683 = vmatpush1.bf16.msra.mxu0 0
  %684 = vmatprep.subr.bf16.mxu0 0
  %685 = vmatpush1.bf16.msra.mxu0 0
  %686 = vmatprep.subr.bf16.mxu0 0
  %687 = vmatpush1.bf16.msra.mxu0 0
  %688 = vmatprep.mubr.bf16.mxu0 0
  %689 = vmatmul.mubr.bf16.gmra.mrb[0].mxu0 %v584
  %v690 = vpop.f32.mrb[0].mxu0
  %v691 = vadd.f32 %v606, %v690
  %v692 = vpop.f32.mrb[0].mxu0
  %v693 = vpop.f32.mrb[0].mxu0
  %v694 = vpop.f32.mrb[0].mxu0
  %695 = vdwg.mxu0
  %v696 = vmax.f32 %v691, 0.0
  %v697 = vld [vmem:[%s9] sm:$0x1]
  %v699 = vlaneseq
  %v700 = vshrl.u32 %v699, 7
  %v701 = vsub.s32 0, %v700
  %v702 = vrot.slane %v697, %v701
  %v704 = vmul.f32 %v696, %v702
  %705 = vadd.xlane.f32.xlu0 %v704
  %v706 = vpop.xlane.xlu0 %705
  %v707 = vld [vmem:[#allocation2] sm:$0x1]
  %v709 = vlaneseq
  %v710 = vshrl.u32 %v709, 7
  %v711 = vsub.s32 0, %v710
  %v712 = vrot.slane %v707, %v711
  %v714 = vadd.f32 %v706, %v712
  %716 = vset.pattern.permute.xlu0 0
  %717 = vperm.xlu0 %716, %v714
  %v718 = vpop.permute.xlu0 %717
  %720 = vst [vmem:[%s11] sm:$0xff] %v718
  // Predicated region
  $region46: #{gnn_forward.1} parent=0 // pred_check
    _
  $region47: #{gnn_forward.1} parent=0 // pred_check_branch
    %722 = sbr.rel (0) target = $region49
  $region48: #{gnn_forward.1} parent=0 // pred_region
    _
  $region49: #{gnn_forward.1} parent=0 // pred_fallthru
    _
  // Predicated region
  $region50: #{gnn_forward.1} parent=0 // pred_check
    _
  $region51: #{gnn_forward.1} parent=0 // pred_check_branch
    %724 = sbr.rel (0) target = $region53
  $region52: #{gnn_forward.1} parent=0 // pred_region
    _
  $region53: #{gnn_forward.1} parent=0 // pred_fallthru
    _

</llo_original>
